<compile_context>
chip_gen: v6e
topology: v6e:2x2x1
jax: 0.10.0
libtpu: 0.0.40
codegen_flags: <defaults>
</compile_context>

<pallas_src>
import functools

import jax
import jax.numpy as jnp
from jax.experimental import pallas as pl
from jax.experimental.pallas import tpu as pltpu


def _softplus(x):
    # Numerically stable log(1 + exp(x)).
    return jnp.maximum(x, 0.0) + jnp.log1p(jnp.exp(-jnp.abs(x)))


def _bce_with_logits(x, y):
    # Numerically stable BCEWithLogitsLoss(reduction='none'):
    #   max(x, 0) - x*y + log(1 + exp(-|x|))
    return jnp.maximum(x, 0.0) - x * y + jnp.log1p(jnp.exp(-jnp.abs(x)))


def _round_up(x, m):
    return (x + m - 1) // m * m


def _neg_loss_kernel(*refs, tile_b, total_rows, adv_temp, use_weight,
                     has_labels, mask_rows):
    """Per-tile partial sum of w_i * neg_row_i over a (tile_b, N) block."""
    it = iter(refs)
    neg_s_ref = next(it)                              # (tile_b, N)
    neg_l_ref = next(it) if has_labels else None      # (tile_b, N)
    w_ref = next(it) if use_weight else None          # (tile_b, 1)
    out_ref = next(it)                                # (1, 1, 128)

    f32 = jnp.float32
    tiny = f32(1e-30)
    x = neg_s_ref[...].astype(f32)     # in-register upcast (no bf16 VPU/EUP on v5e)

    if use_weight:
        w_eff = w_ref[...].astype(f32)                # (tile_b, 1)
    else:
        w_eff = jnp.ones((tile_b, 1), f32)

    valid = None
    if mask_rows:
        row = (jax.lax.broadcasted_iota(jnp.int32, (tile_b, 1), 0)
               + pl.program_id(0) * tile_b)
        valid = row < total_rows
        # Partial last block: tail rows hold unspecified bits (possibly Inf/NaN).
        # Mask the scores themselves before any exp/log (0 * NaN = NaN otherwise)
        # and zero their weights so they drop out of every sum.
        x = jnp.where(valid, x, 0.0)
        w_eff = jnp.where(valid, w_eff, 0.0)

    y = None
    if has_labels:
        y = neg_l_ref[...].astype(f32)
        if mask_rows:
            y = jnp.where(valid, y, 0.0)

    if adv_temp == 1.0:
        # Shared-exp fast path: one exp + one log per element feed BOTH the
        # detached softmax and the softplus/BCE term:
        #   softplus(x) = m + log(exp(-m) + exp(x - m)),  m = max(row_max, 0)
        # EUP pushes per element drop 3 -> 2 (the binding slot on v6e/v7x).
        m = jnp.maximum(jnp.max(x, axis=1, keepdims=True), 0.0)   # (tile_b, 1)
        e = jnp.exp(x - m)                                        # <= 1, no overflow
        em = jnp.exp(-m)                                          # per-row, negligible
        inner = jnp.maximum(em + e, tiny)     # guard m >~ 88 and x << m underflow
        L = m + jnp.log(inner)                # == softplus(x)
        if has_labels:
            L = L - x * y                     # BCE(x, y) = softplus(x) - x*y
        sum_e = jnp.maximum(jnp.sum(e, axis=1, keepdims=True), tiny)
        inv = pl.reciprocal(sum_e, approx=True)
        inv = inv * (2.0 - sum_e * inv)       # one Newton step -> ~f32 accuracy
        neg_row = jnp.sum(e * L, axis=1, keepdims=True) * inv
    else:
        L = _bce_with_logits(x, y) if has_labels else _softplus(x)
        if adv_temp != 0.0:
            z = x * adv_temp
            z = z - jnp.max(z, axis=1, keepdims=True)
            e = jnp.exp(z)
            sum_e = jnp.maximum(jnp.sum(e, axis=1, keepdims=True), tiny)
            inv = pl.reciprocal(sum_e, approx=True)
            inv = inv * (2.0 - sum_e * inv)
            neg_row = jnp.sum(e * L, axis=1, keepdims=True) * inv
        else:
            neg_row = jnp.sum(L, axis=1, keepdims=True)

    neg_sum = jnp.sum(w_eff * neg_row)
    # Lane-dense (1, 1, 128) partial-sum block; wrapper reads lane 0.
    out_ref[...] = jnp.full((1, 1, 128), neg_sum, jnp.float32)


def bce_loss_pallas(pos_score, neg_score, pos_label=None, neg_label=None,
                    subsampling_weight=None, *, adv_temp=1.0, use_weight=True,
                    tile_b=None):
    f32 = jnp.float32
    if pos_score.ndim == 1:
        pos_score = pos_score[:, None]
    B, N = neg_score.shape
    has_labels = (pos_label is not None) and (neg_label is not None)
    if has_labels and pos_label.ndim == 1:
        pos_label = pos_label[:, None]

    # ---- O(B) positive branch + weight sums in plain XLA (tiny tensors); the
    # Pallas kernel only streams the dominant (B, N) negative tensors. ----
    ps = pos_score.astype(f32)
    if has_labels:
        pos_loss = _bce_with_logits(ps, pos_label.astype(f32))
    else:
        pos_loss = _softplus(-ps)          # BCE(x, 1) == softplus(-x)
    pos_loss = pos_loss[:, 0]              # squeeze(dim=1)

    if use_weight:
        assert subsampling_weight is not None
        w = subsampling_weight.astype(f32).reshape(B)
        w_sum = jnp.sum(w)

    # ---- tile_b: byte-budget sized (~2 MiB of neg_score per block), rounded to
    # packed-sublane granularity, shrunk until double-buffered inputs + f32 block
    # temporaries fit the VMEM budget (v7x only has 64 MiB / TC). ----
    itemsize = jnp.dtype(neg_score.dtype).itemsize
    gran = 8 if itemsize >= 4 else (16 if itemsize == 2 else 32)
    n_big = 2 if has_labels else 1

    def vmem_est(tb):
        inp = 2 * n_big * tb * N * itemsize            # double-buffered streams
        if use_weight:
            inp += 2 * tb * 4
        return inp + 6 * tb * N * 4 + (1 << 20)        # f32 intermediates + slack

    if tile_b is None:
        tile_b = max(gran, (2 * 1024 * 1024) // max(1, N * itemsize))
        # Keep >= 2 grid steps (v7x megacore) as long as blocks stay >= 1 MiB.
        half = max(gran, _round_up(B, 2 * gran) // 2)
        if half * N * itemsize >= (1 << 20):
            tile_b = min(tile_b, half)
        while tile_b > gran and vmem_est(tile_b) > (36 << 20):
            tile_b = max(gran, tile_b // 2)
        tile_b = max(gran, (tile_b // gran) * gran)
    else:
        tile_b = max(8, (int(tile_b) // 8) * 8)
    if tile_b >= B:
        tile_b = B                 # single block; row dim == full array dim is legal

    vmem_limit = int(min(56 << 20, max(32 << 20, 2 * vmem_est(tile_b))))

    num_tiles = pl.cdiv(B, tile_b)
    mask_rows = (B % tile_b) != 0          # partial last block -> mask in-kernel

    inputs = [neg_score]
    in_specs = [pl.BlockSpec((tile_b, N), lambda i: (i, 0))]
    if has_labels:
        inputs.append(neg_label)
        in_specs.append(pl.BlockSpec((tile_b, N), lambda i: (i, 0)))
    if use_weight:
        inputs.append(w.reshape(B, 1))
        in_specs.append(pl.BlockSpec((tile_b, 1), lambda i: (i, 0)))

    kernel = functools.partial(
        _neg_loss_kernel, tile_b=tile_b, total_rows=B,
        adv_temp=float(adv_temp), use_weight=bool(use_weight),
        has_labels=has_labels, mask_rows=mask_rows)

    partials = pl.pallas_call(
        kernel,
        out_shape=jax.ShapeDtypeStruct((num_tiles, 1, 128), jnp.float32),
        grid=(num_tiles,),
        in_specs=in_specs,
        out_specs=pl.BlockSpec((1, 1, 128), lambda i: (i, 0, 0)),
        compiler_params=pltpu.CompilerParams(
            dimension_semantics=("parallel",),
            vmem_limit_bytes=vmem_limit),
    )(*inputs)

    neg_sum = jnp.sum(partials[:, 0, 0])

    if use_weight:
        loss = (jnp.sum(w * pos_loss) / w_sum + neg_sum / w_sum) * 0.5
    else:
        loss = (jnp.sum(pos_loss) + neg_sum) / f32(B)
    # TODO(synk): DistMult/ComplEx regularization (model.reg) lives in the
    # embedding model, not in this loss; not implemented here.
    # TODO(synk): forward-only; a custom_vjp (softmax weights stop_gradient'ed,
    # matching PyTorch's .detach()) is needed for training.
    # TODO(synk): for production N < 128, fold 128//N rows into the lane axis
    # (free wrapper reshape + per-group in-kernel reductions) to recover lane
    # density on the EUP/VPU; Buffered(3)/MXU-offload only after profiling.
    return loss


def _reference(pos_score, neg_score, pos_label, neg_label, w, adv_temp, use_weight):
    f32 = jnp.float32
    ps = pos_score.astype(f32).reshape(pos_score.shape[0], -1)
    ns = neg_score.astype(f32)
    plab = pos_label.astype(f32).reshape(pos_label.shape[0], -1)
    nlab = neg_label.astype(f32)
    pos_loss = _bce_with_logits(ps, plab)[:, 0]
    neg_loss = _bce_with_logits(ns, nlab)
    if adv_temp != 0.0:
        sm = jax.nn.softmax(ns * adv_temp, axis=1)
        neg_row = jnp.sum(sm * neg_loss, axis=1)
    else:
        neg_row = jnp.sum(neg_loss, axis=1)
    if use_weight:
        w = w.astype(f32)
        return (jnp.sum(w * pos_loss) / jnp.sum(w)
                + jnp.sum(w * neg_row) / jnp.sum(w)) * 0.5
    return jnp.mean(pos_loss + neg_row)


if __name__ == "__main__":
    key = jax.random.PRNGKey(0)
    k1, k2, k3, k4, k5 = jax.random.split(key, 5)

    B, N = 8, 32
    pos_s = jax.random.normal(k1, (B, 1), jnp.float32)
    neg_s = jax.random.normal(k2, (B, N), jnp.float32)
    pos_l = jnp.ones((B, 1), jnp.float32)
    neg_l = jnp.zeros((B, N), jnp.float32)
    w = jax.random.uniform(k3, (B,), jnp.float32, 0.5, 1.5)

    # Case 1: label tensors, weighted, self-adversarial (shared-exp path), f32.
    out1 = jax.block_until_ready(
        bce_loss_pallas(pos_s, neg_s, pos_l, neg_l, w,
                        adv_temp=1.0, use_weight=True))
    ref1 = _reference(pos_s, neg_s, pos_l, neg_l, w, 1.0, True)
    assert jnp.allclose(out1, ref1, rtol=1e-5, atol=1e-5), (out1, ref1)

    # Case 2: constant-label fast path (no label tensors), unweighted, adv_temp=0.
    out2 = jax.block_until_ready(
        bce_loss_pallas(pos_s, neg_s, adv_temp=0.0, use_weight=False))
    ref2 = _reference(pos_s, neg_s, pos_l, neg_l, w, 0.0, False)
    assert jnp.allclose(out2, ref2, rtol=1e-5, atol=1e-5), (out2, ref2)

    # Case 3: general adv_temp (non-shared-exp path), labels, weighted, f32.
    out3 = jax.block_until_ready(
        bce_loss_pallas(pos_s, neg_s, pos_l, neg_l, w,
                        adv_temp=0.5, use_weight=True))
    ref3 = _reference(pos_s, neg_s, pos_l, neg_l, w, 0.5, True)
    assert jnp.allclose(out3, ref3, rtol=1e-5, atol=1e-5), (out3, ref3)

    # Case 4: bf16 scores, no labels, weighted, adv_temp=1, ragged batch
    # (B=10, tile_b=8 -> partial last block handled by in-kernel masking,
    # no wrapper-side padding copy).
    B4, N4 = 10, 32
    ps4 = jax.random.normal(k4, (B4, 1), jnp.float32).astype(jnp.bfloat16)
    ns4 = jax.random.normal(k5, (B4, N4), jnp.float32).astype(jnp.bfloat16)
    w4 = jax.random.uniform(k3, (B4,), jnp.float32, 0.5, 1.5)
    out4 = jax.block_until_ready(
        bce_loss_pallas(ps4, ns4, subsampling_weight=w4,
                        adv_temp=1.0, use_weight=True, tile_b=8))
    ref4 = _reference(ps4.astype(jnp.float32), ns4.astype(jnp.float32),
                      jnp.ones((B4, 1), jnp.float32),
                      jnp.zeros((B4, N4), jnp.float32), w4, 1.0, True)
    assert jnp.allclose(out4, ref4, rtol=1e-4, atol=1e-4), (out4, ref4)

    # Case 5: non-multiple-of-8 batch with the default tile heuristic (single
    # whole-batch block), f32, unweighted, shared-exp path.
    ps5 = ps4.astype(jnp.float32)
    ns5 = ns4.astype(jnp.float32)
    out5 = jax.block_until_ready(
        bce_loss_pallas(ps5, ns5, adv_temp=1.0, use_weight=False))
    ref5 = _reference(ps5, ns5,
                      jnp.ones((B4, 1), jnp.float32),
                      jnp.zeros((B4, N4), jnp.float32), w4, 1.0, False)
    assert jnp.allclose(out5, ref5, rtol=1e-5, atol=1e-5), (out5, ref5)

    print("KERNEL_OK")
</pallas_src>

<mosaic_0001>
module attributes {stable_mosaic.version = 11 : i64} {
  func.func @_neg_loss_kernel(%arg0: i32, %arg1: memref<8x32xf32, #tpu.memory_space<vmem>>, %arg2: memref<8x32xf32, #tpu.memory_space<vmem>>, %arg3: memref<8x1xf32, #tpu.memory_space<vmem>>, %arg4: memref<1x1x128xf32, #tpu.memory_space<vmem>>) attributes {dimension_semantics = [#tpu.dimension_semantics<parallel>], iteration_bounds = array<i64: 1>, scalar_prefetch = 0 : i64, scratch_operands = 0 : i64, tpu.core_type = #tpu.core_type<tc>, window_params = [{transform_indices = @transform_0, window_bounds = array<i64: 8, 32>}, {transform_indices = @transform_1, window_bounds = array<i64: 8, 32>}, {transform_indices = @transform_2, window_bounds = array<i64: 8, 1>}, {transform_indices = @transform_3, window_bounds = array<i64: 1, 1, 128>}]} {
    %c0 = arith.constant 0 : index
    %c0_0 = arith.constant 0 : index
    %0 = vector.load %arg1[%c0, %c0_0] : memref<8x32xf32, #tpu.memory_space<vmem>>, vector<8x32xf32>
    %c0_1 = arith.constant 0 : index
    %c0_2 = arith.constant 0 : index
    %1 = vector.load %arg3[%c0_1, %c0_2] : memref<8x1xf32, #tpu.memory_space<vmem>>, vector<8x1xf32>
    %c0_3 = arith.constant 0 : index
    %c0_4 = arith.constant 0 : index
    %2 = vector.load %arg2[%c0_3, %c0_4] : memref<8x32xf32, #tpu.memory_space<vmem>>, vector<8x32xf32>
    %cst = arith.constant dense<0xFF800000> : vector<8xf32>
    %3 = vector.multi_reduction <maximumf>, %0, %cst [1] : vector<8x32xf32> to vector<8xf32>
    %4 = vector.shape_cast %3 : vector<8xf32> to vector<8x1xf32>
    %cst_5 = arith.constant 0.000000e+00 : f32
    %5 = vector.broadcast %cst_5 : f32 to vector<8x1xf32>
    %6 = arith.maximumf %4, %5 : vector<8x1xf32>
    %7 = vector.broadcast %6 : vector<8x1xf32> to vector<8x32xf32>
    %8 = arith.subf %0, %7 : vector<8x32xf32>
    %9 = math.exp %8 : vector<8x32xf32>
    %cst_6 = arith.constant 0.000000e+00 : f32
    %10 = vector.broadcast %cst_6 : f32 to vector<8x1xf32>
    %11 = arith.subf %10, %6 : vector<8x1xf32>
    %12 = math.exp %11 : vector<8x1xf32>
    %13 = vector.broadcast %12 : vector<8x1xf32> to vector<8x32xf32>
    %14 = arith.addf %13, %9 : vector<8x32xf32>
    %cst_7 = arith.constant 1.000000e-30 : f32
    %15 = vector.broadcast %cst_7 : f32 to vector<8x32xf32>
    %16 = arith.maximumf %14, %15 : vector<8x32xf32>
    %17 = math.log %16 : vector<8x32xf32>
    %18 = vector.broadcast %6 : vector<8x1xf32> to vector<8x32xf32>
    %19 = arith.addf %18, %17 : vector<8x32xf32>
    %20 = arith.mulf %0, %2 : vector<8x32xf32>
    %21 = arith.subf %19, %20 : vector<8x32xf32>
    %cst_8 = arith.constant dense<0.000000e+00> : vector<8xf32>
    %22 = vector.multi_reduction <add>, %9, %cst_8 [1] : vector<8x32xf32> to vector<8xf32>
    %23 = vector.shape_cast %22 : vector<8xf32> to vector<8x1xf32>
    %cst_9 = arith.constant 1.000000e-30 : f32
    %24 = vector.broadcast %cst_9 : f32 to vector<8x1xf32>
    %25 = arith.maximumf %23, %24 : vector<8x1xf32>
    %26 = tpu.reciprocal %25 {approx = true} : vector<8x1xf32> -> vector<8x1xf32>
    %27 = arith.mulf %25, %26 : vector<8x1xf32>
    %cst_10 = arith.constant 2.000000e+00 : f32
    %28 = vector.broadcast %cst_10 : f32 to vector<8x1xf32>
    %29 = arith.subf %28, %27 : vector<8x1xf32>
    %30 = arith.mulf %26, %29 : vector<8x1xf32>
    %31 = arith.mulf %9, %21 : vector<8x32xf32>
    %cst_11 = arith.constant dense<0.000000e+00> : vector<8xf32>
    %32 = vector.multi_reduction <add>, %31, %cst_11 [1] : vector<8x32xf32> to vector<8xf32>
    %33 = vector.shape_cast %32 : vector<8xf32> to vector<8x1xf32>
    %34 = arith.mulf %33, %30 : vector<8x1xf32>
    %35 = arith.mulf %1, %34 : vector<8x1xf32>
    %36 = vector.shape_cast %35 : vector<8x1xf32> to vector<1x8x1xf32>
    %cst_12 = arith.constant dense<0.000000e+00> : vector<1xf32>
    %37 = vector.multi_reduction <add>, %36, %cst_12 [1, 2] : vector<1x8x1xf32> to vector<1xf32>
    %38 = vector.shape_cast %37 : vector<1xf32> to vector<1x1x1xf32>
    %39 = vector.extract %38[0, 0, 0] : f32 from vector<1x1x1xf32>
    %40 = vector.broadcast %39 : f32 to vector<1x1x128xf32>
    %c0_13 = arith.constant 0 : index
    %c0_14 = arith.constant 0 : index
    %c0_15 = arith.constant 0 : index
    %41 = vector.load %arg4[%c0_13, %c0_14, %c0_15] : memref<1x1x128xf32, #tpu.memory_space<vmem>>, vector<1x1x128xf32>
    tpu.vector_store %arg4[%c0_13, %c0_14, %c0_15], %40 {strides = array<i32>} : memref<1x1x128xf32, #tpu.memory_space<vmem>>, vector<1x1x128xf32>,
    return
  }
  func.func @transform_0(%arg0: i32) -> (i32, i32) {
    %c0_i32 = arith.constant 0 : i32
    %c0_i32_0 = arith.constant 0 : i32
    return %arg0, %c0_i32 : i32, i32
  }
  func.func @transform_1(%arg0: i32) -> (i32, i32) {
    %c0_i32 = arith.constant 0 : i32
    %c0_i32_0 = arith.constant 0 : i32
    return %arg0, %c0_i32 : i32, i32
  }
  func.func @transform_2(%arg0: i32) -> (i32, i32) {
    %c0_i32 = arith.constant 0 : i32
    %c0_i32_0 = arith.constant 0 : i32
    return %arg0, %c0_i32 : i32, i32
  }
  func.func @transform_3(%arg0: i32) -> (i32, i32, i32) {
    %c0_i32 = arith.constant 0 : i32
    %c0_i32_0 = arith.constant 0 : i32
    %c0_i32_1 = arith.constant 0 : i32
    return %arg0, %c0_i32, %c0_i32_0 : i32, i32, i32
  }
}

</mosaic_0001>

<llo_original>
// kernel: tpu_custom_call.1
$region0: #{tpu_custom_call.1}
  #allocation0 [shape = 'u32[]', space=smem, size = 0x4, offset = 0x4, fixed_abs, tag = 'smem constant byte address 0x4 - core index']
  #allocation1 [shape = 'u32[144,128]{1,0:T(1,128)}', space=vmem, size = 0x12000, scoped, tag = 'internal scratch']
  %s0 = inlined_call_operand.vmem [shape: f32[8,32], index: 0, kind: input, shape index: {}]
  %s1 = inlined_call_operand.hbm [shape: f32[8,32], index: 1, kind: input, shape index: {}]
  %s2 = inlined_call_operand.vmem [shape: f32[8,1], index: 2, kind: input, shape index: {}]
  %s3 = inlined_call_operand.hbm [shape: f32[1,1,128], index: 3, kind: output, shape index: {}]
  %s4 = sld [smem:[#allocation0]]
  $region26: #{tpu_custom_call.1} parent=0
    _
  %s6 = ssub.s32 1, %s4
  %s7 = scalar_select 0, %s6, %s4
  $region1: #{tpu_custom_call.1} parent=0
    #allocation2 [shape = 'u8[4096]{0}', space=vmem, size = 0x1000, scoped, tag = 'input window, operand 1, single buffered']
    #allocation3 [shape = 's32[1]{0}', space=sflag, size = 0x4, scoped, tag = 'scoped memory for tpu_custom_call.1']
    #allocation4 [shape = 's32[1]{0}', space=sflag, size = 0x4, scoped, tag = 'scoped memory for tpu_custom_call.1']
    #allocation5 [shape = 'u8[512]{0}', space=vmem, size = 0x400, scoped, tag = 'output window, operand 0, single buffered']
    %8 = vsyncpa [#allocation3], 0
    %9 = vsyncpa [#allocation4], 0
    // Predicated region
    $region2: #{tpu_custom_call.1} parent=1 // pred_check
      _
    $region3: #{tpu_custom_call.1} parent=1 // pred_check_branch
      %11 = sbr.rel (0) target = $region5
    $region4: #{tpu_custom_call.1} parent=1 // pred_region
      _
    $region5: #{tpu_custom_call.1} parent=1 // pred_fallthru
      _
    // Predicated region
    $region6: #{tpu_custom_call.1} parent=1 // pred_check
      _
    $region7: #{tpu_custom_call.1} parent=1 // pred_check_branch
      %13 = sbr.rel (0) target = $region9
    $region8: #{tpu_custom_call.1} parent=1 // pred_region
      %s15 = ssub.s32 128, 128
      %16 = vsyncadd [#allocation3], %s15
      %s18 = sshll.u32 [#allocation2], 4
      %s19 = int_to_ptr.vmem [resolvable:$true] %s18
      %21 = dma.hbm_to_vmem [thread:$0]  %s1, 128, %s19, [#allocation3]
    $region9: #{tpu_custom_call.1} parent=1 // pred_fallthru
      _
    // Predicated region
    $region10: #{tpu_custom_call.1} parent=1 // pred_check
      _
    $region11: #{tpu_custom_call.1} parent=1 // pred_check_branch
      %23 = sbr.rel (0) target = $region13
    $region12: #{tpu_custom_call.1} parent=1 // pred_region
      _
    $region13: #{tpu_custom_call.1} parent=1 // pred_fallthru
      _
    // Predicated region
    $region14: #{tpu_custom_call.1} parent=1 // pred_check
      _
    $region15: #{tpu_custom_call.1} parent=1 // pred_check_branch
      %25 = sbr.rel (0) target = $region17
    $region16: #{tpu_custom_call.1} parent=1 // pred_region
      %26 = dma.done [#allocation3], 128
    $region17: #{tpu_custom_call.1} parent=1 // pred_fallthru
      _
    %v27 = vld [vmem:[%s0] sm:$0xff]
    %v28 = vld [vmem:[%s2] sm:$0xff]
    %v29 = vld [vmem:[#allocation2] sm:$0xff]
    %vm30 = vcmask 261120
    %v31 = vsel %vm30, %v27, -inf
    %32 = vmax.xlane.f32.xlu0 %v31
    %v33 = vpop.xlane.xlu0 %32
    %v34 = vmax.f32 %v33, 0.0
    %v35 = vsub.f32 %v27, %v34
    %v36 = vmul.f32 %v35, 1.442695
    %v37 = vpow.pop %v36
    %v38 = vsub.f32 0.0, %v34
    %v39 = vmul.f32 %v38, 1.442695
    %v40 = vpow.pop %v39
    %v41 = vadd.f32 %v40, %v37
    %v42 = vmax.f32 %v41, 1e-30
    %v43 = vlog2.pop %v42
    %v44 = vmul.f32 %v43, 0.6931472
    %v45 = vadd.f32 %v34, %v44
    %v46 = vmul.f32 %v27, %v29
    %v47 = vsub.f32 %v45, %v46
    %v48 = vsel %vm30, %v37, 0.0
    %49 = vadd.xlane.f32.xlu0 %v48
    %v50 = vpop.xlane.xlu0 %49
    %v51 = vmax.f32 %v50, 1e-30
    %v52 = vrcp.pop %v51
    %v53 = vmul.f32 %v51, %v52
    %v54 = vsub.f32 2.0, %v53
    %v55 = vmul.f32 %v52, %v54
    %v56 = vmul.f32 %v37, %v47
    %v57 = vsel %vm30, %v56, 0.0
    %58 = vadd.xlane.f32.xlu0 %v57
    %v59 = vpop.xlane.xlu0 %58
    %v60 = vmul.f32 %v59, %v55
    %v61 = vmul.f32 %v28, %v60
    %vm62 = vcmask 7168
    %v63 = vsel %vm62, %v61, 0.0
    %64 = vadd.xlane.f32.xlu0 %v63
    %v65 = vpop.xlane.xlu0 %64
    %v66 = vrot.slane %v65, 4
    %v67 = vadd.f32 %v65, %v66
    %v68 = vrot.slane %v67, 2
    %v69 = vadd.f32 %v67, %v68
    %v70 = vrot.slane %v69, 1
    %v71 = vadd.f32 %v69, %v70
    %s72 = vtos %v71
    %v73 = vstv %s72
    %74 = vst [vmem:[#allocation5] sm:$0x1] %v73
    // Predicated region
    $region18: #{tpu_custom_call.1} parent=1 // pred_check
      _
    $region19: #{tpu_custom_call.1} parent=1 // pred_check_branch
      %76 = sbr.rel (0) target = $region21
    $region20: #{tpu_custom_call.1} parent=1 // pred_region
      %s78 = ssub.s32 16, 16
      %79 = vsyncadd [#allocation4], %s78
      %s81 = sshll.u32 [#allocation5], 4
      %s82 = int_to_ptr.vmem [resolvable:$true] %s81
      %84 = dma.vmem_to_hbm [thread:$0]  %s82, 16, %s3, [#allocation4]
    $region21: #{tpu_custom_call.1} parent=1 // pred_fallthru
      _
    // Predicated region
    $region22: #{tpu_custom_call.1} parent=1 // pred_check
      _
    $region23: #{tpu_custom_call.1} parent=1 // pred_check_branch
      %86 = sbr.rel (0) target = $region25
    $region24: #{tpu_custom_call.1} parent=1 // pred_region
      %87 = dma.done [#allocation4], 16
    $region25: #{tpu_custom_call.1} parent=1 // pred_fallthru
      _
    %88 = vsyncpa [#allocation3], 1
    %89 = vsyncpa [#allocation4], 1

</llo_original>
